<compile_context>
chip_gen: v5e
topology: v5e:2x2
jax: 0.10.0
libtpu: 0.0.40
codegen_flags: <defaults>
</compile_context>

<pallas_src>
import functools

import jax
import jax.numpy as jnp
from jax.experimental import pallas as pl
from jax.experimental.pallas import tpu as pltpu

EPS = 1e-8          # matches RunningMeanStd(epsilon=1e-08)
LANE = 128          # TPU lane width
_MIB = 1024 * 1024


def _vmem_budget_bytes():
    """Generation-aware VMEM budget (leave headroom for Mosaic scratch/semaphores)."""
    cap = 64 * _MIB                      # conservative fallback = v7x per-TC VMEM
    try:
        cap = int(pltpu.get_tpu_info().vmem_capacity_bytes)
    except Exception:
        pass
    # v7x (64 MiB): min(40, 48) = 40 MiB.  v5e/v6e (128 MiB): min(104, 96) = 96 MiB.
    return int(max(16 * _MIB, min(cap - 24 * _MIB, int(cap * 0.75))))


# ----------------------------------------------------------------------------
# Single-sweep fused kernel: batch moments + Welford merge + normalize.
# obs tile (B, TILE_D); stats tiles (1, TILE_D) f32; count (1,) f32 in SMEM.
# ----------------------------------------------------------------------------
def _rms_fused_kernel(obs_ref, mean_ref, var_ref, count_ref,
                      out_ref, new_mean_ref, new_var_ref, *, batch_count):
    x = obs_ref[...].astype(jnp.float32)
    bc = jnp.float32(batch_count)

    # two-pass batch moments over the batch (sublane) axis, correction=0
    batch_mean = jnp.mean(x, axis=0, keepdims=True)            # (1, TILE_D)
    diff = x - batch_mean
    batch_var = jnp.mean(diff * diff, axis=0, keepdims=True)

    mean = mean_ref[...]
    var = var_ref[...]
    count = count_ref[0]

    # update_mean_var_count_from_moments
    tot = count + bc
    w = bc / tot
    delta = batch_mean - mean
    new_mean = mean + delta * w
    m2 = var * count + batch_var * bc + (delta * delta) * (count * w)
    new_var = m2 / tot

    new_mean_ref[...] = new_mean
    new_var_ref[...] = new_var

    # normalize with the UPDATED statistics.  rsqrt on the (1, TILE_D) row (EUP);
    # (x - new_mean) == diff + delta * (count / tot) -> reuse diff, row correction.
    inv_std = jax.lax.rsqrt(jnp.maximum(new_var, 0.0) + EPS)
    corr = delta * (count / tot)
    out_ref[...] = ((diff + corr) * inv_std).astype(out_ref.dtype)


# ----------------------------------------------------------------------------
# Two-sweep path, pass 1: accumulate per-feature shifted sums over batch tiles.
# grid = (D tiles "parallel", B tiles "arbitrary" last); stats output resident.
# ----------------------------------------------------------------------------
def _rms_stats_kernel(obs_ref, mean_ref, var_ref, count_ref,
                      new_mean_ref, new_var_ref, sum_ref, sumsq_ref,
                      *, total_rows, rows_per_tile):
    bi = pl.program_id(1)

    @pl.when(bi == 0)
    def _():
        sum_ref[...] = jnp.zeros_like(sum_ref)
        sumsq_ref[...] = jnp.zeros_like(sumsq_ref)

    mean = mean_ref[...]                               # old running mean (shift)
    x = obs_ref[...].astype(jnp.float32)               # (tb, TILE_D)
    row = jax.lax.broadcasted_iota(jnp.int32, x.shape, 0) + bi * rows_per_tile
    d = jnp.where(row < total_rows, x - mean, 0.0)     # mask ragged batch rows
    sum_ref[...] += jnp.sum(d, axis=0, keepdims=True)
    sumsq_ref[...] += jnp.sum(d * d, axis=0, keepdims=True)

    @pl.when(bi == pl.num_programs(1) - 1)
    def _():
        bc = jnp.float32(total_rows)
        var = var_ref[...]
        count = count_ref[0]
        mean_d = sum_ref[...] / bc                     # == batch_mean - mean
        batch_var = jnp.maximum(sumsq_ref[...] / bc - mean_d * mean_d, 0.0)
        tot = count + bc
        w = bc / tot
        new_mean_ref[...] = mean + mean_d * w
        m2 = var * count + batch_var * bc + (mean_d * mean_d) * (count * w)
        new_var_ref[...] = m2 / tot


# ----------------------------------------------------------------------------
# Two-sweep path, pass 2: normalize obs with the merged (updated) statistics.
# ----------------------------------------------------------------------------
def _rms_normalize_kernel(obs_ref, mean_ref, var_ref, out_ref):
    x = obs_ref[...].astype(jnp.float32)
    inv_std = jax.lax.rsqrt(jnp.maximum(var_ref[...], 0.0) + EPS)
    out_ref[...] = ((x - mean_ref[...]) * inv_std).astype(out_ref.dtype)


def running_mean_std_forward(obs, running_mean, running_var, count, *,
                             batch_tile=None):
    """obs: [B, D] (any float dtype); running_mean/var: [D] f32; count: scalar f32.

    Returns (normalized_obs [B, D] in obs.dtype, new_mean [D] f32,
             new_var [D] f32, new_count scalar f32).
    `batch_tile` forces the batch-tiled two-sweep path (mainly for testing).
    """
    B, D = obs.shape
    obs_bytes = jnp.dtype(obs.dtype).itemsize
    d_lanes = pl.cdiv(D, LANE)
    budget = _vmem_budget_bytes()

    mean2d = running_mean.astype(jnp.float32).reshape(1, D)
    var2d = running_var.astype(jnp.float32).reshape(1, D)
    count1 = jnp.reshape(count, (1,)).astype(jnp.float32)

    # per 128-lane column group, fused path: double-buffered in + out obs blocks
    # (+ f32 temps x/diff) + tiny stats rows.
    fused_per_group = (B * (4 * obs_bytes + 2 * 4) + 8 * 4 * 4) * LANE
    fused_max_lanes = budget // max(fused_per_group, 1)
    use_batch_tiling = (batch_tile is not None) or (fused_max_lanes < 1)

    if not use_batch_tiling:
        # ---------------- single-sweep fused path ----------------
        tile_lanes = int(min(d_lanes, fused_max_lanes))
        if tile_lanes >= d_lanes and d_lanes >= 2:
            tile_lanes = pl.cdiv(d_lanes, 2)      # >=2 grid steps for v7x megacore
        grid_d = pl.cdiv(d_lanes, tile_lanes)
        tile = D if grid_d == 1 else tile_lanes * LANE

        kernel = functools.partial(_rms_fused_kernel, batch_count=float(B))
        out, new_mean2d, new_var2d = pl.pallas_call(
            kernel,
            out_shape=(
                jax.ShapeDtypeStruct((B, D), obs.dtype),
                jax.ShapeDtypeStruct((1, D), jnp.float32),
                jax.ShapeDtypeStruct((1, D), jnp.float32),
            ),
            grid=(grid_d,),
            in_specs=[
                pl.BlockSpec((B, tile), lambda j: (0, j)),
                pl.BlockSpec((1, tile), lambda j: (0, j)),
                pl.BlockSpec((1, tile), lambda j: (0, j)),
                pl.BlockSpec(memory_space=pltpu.MemorySpace.SMEM),
            ],
            out_specs=(
                pl.BlockSpec((B, tile), lambda j: (0, j)),
                pl.BlockSpec((1, tile), lambda j: (0, j)),
                pl.BlockSpec((1, tile), lambda j: (0, j)),
            ),
            compiler_params=pltpu.CompilerParams(
                dimension_semantics=("parallel",),
                vmem_limit_bytes=budget,
            ),
            cost_estimate=pl.CostEstimate(
                flops=int(6 * B * D), transcendentals=int(D),
                bytes_accessed=int(2 * B * D * obs_bytes + 4 * D * 4)),
        )(obs, mean2d, var2d, count1)
    else:
        # ---------------- batch-tiled two-sweep path ----------------
        tb = int(batch_tile) if batch_tile is not None else 1024
        tb = min(tb, B)
        tb = max(8, (tb // 8) * 8)                # sublane multiple of 8
        if tb >= B:
            tb = B                                # full array dim is always legal
        per_group = (tb * (4 * obs_bytes + 2 * 4) + 16 * 4 * 4) * LANE
        tile_lanes = int(min(d_lanes, max(1, budget // per_group)))
        if tile_lanes >= d_lanes and d_lanes >= 2:
            tile_lanes = pl.cdiv(d_lanes, 2)
        grid_d = pl.cdiv(d_lanes, tile_lanes)
        tile = D if grid_d == 1 else tile_lanes * LANE
        grid_b = pl.cdiv(B, tb)

        stats_kernel = functools.partial(
            _rms_stats_kernel, total_rows=B, rows_per_tile=tb)
        new_mean2d, new_var2d = pl.pallas_call(
            stats_kernel,
            out_shape=(
                jax.ShapeDtypeStruct((1, D), jnp.float32),
                jax.ShapeDtypeStruct((1, D), jnp.float32),
            ),
            grid=(grid_d, grid_b),
            in_specs=[
                pl.BlockSpec((tb, tile), lambda j, i: (i, j)),
                pl.BlockSpec((1, tile), lambda j, i: (0, j)),
                pl.BlockSpec((1, tile), lambda j, i: (0, j)),
                pl.BlockSpec(memory_space=pltpu.MemorySpace.SMEM),
            ],
            out_specs=(
                pl.BlockSpec((1, tile), lambda j, i: (0, j)),
                pl.BlockSpec((1, tile), lambda j, i: (0, j)),
            ),
            scratch_shapes=[pltpu.VMEM((1, tile), jnp.float32),
                            pltpu.VMEM((1, tile), jnp.float32)],
            compiler_params=pltpu.CompilerParams(
                dimension_semantics=("parallel", "arbitrary"),
                vmem_limit_bytes=budget,
            ),
            cost_estimate=pl.CostEstimate(
                flops=int(4 * B * D), transcendentals=0,
                bytes_accessed=int(B * D * obs_bytes + 4 * D * 4)),
        )(obs, mean2d, var2d, count1)

        out = pl.pallas_call(
            _rms_normalize_kernel,
            out_shape=jax.ShapeDtypeStruct((B, D), obs.dtype),
            grid=(grid_d, grid_b),
            in_specs=[
                pl.BlockSpec((tb, tile), lambda j, i: (i, j)),
                pl.BlockSpec((1, tile), lambda j, i: (0, j)),
                pl.BlockSpec((1, tile), lambda j, i: (0, j)),
            ],
            out_specs=pl.BlockSpec((tb, tile), lambda j, i: (i, j)),
            compiler_params=pltpu.CompilerParams(
                dimension_semantics=("parallel", "parallel"),
                vmem_limit_bytes=budget,
            ),
            cost_estimate=pl.CostEstimate(
                flops=int(2 * B * D), transcendentals=int(D),
                bytes_accessed=int(2 * B * D * obs_bytes + 2 * D * 4)),
        )(obs, new_mean2d, new_var2d)

    # Scalar count merge is trivial; do it in the wrapper.
    # NOTE: f32 count loses exactness past 2^24 samples (same as the torch f32 buffer).
    new_count = count.astype(jnp.float32) + jnp.float32(B)

    # TODO(synk): update=False path (normalize-only with stored stats) would reuse
    # the pass-2 normalize kernel directly.
    return out, new_mean2d[0], new_var2d[0], new_count


def _reference(obs, running_mean, running_var, count):
    obs32 = obs.astype(jnp.float32)
    batch_mean = jnp.mean(obs32, axis=0)
    batch_var = jnp.var(obs32, axis=0)  # ddof=0
    batch_count = obs.shape[0]
    delta = batch_mean - running_mean
    tot = count + batch_count
    new_mean = running_mean + delta * batch_count / tot
    m2 = (running_var * count + batch_var * batch_count
          + jnp.square(delta) * count * batch_count / tot)
    new_var = m2 / tot
    out = (obs32 - new_mean) / jnp.sqrt(new_var + EPS)
    return out, new_mean, new_var, tot


def _check(got, ref, rtol=1e-5, atol=1e-5):
    out, nm, nv, nc = got
    ro, rm, rv, rc = ref
    assert jnp.allclose(out, ro, rtol=rtol, atol=atol)
    assert jnp.allclose(nm, rm, rtol=rtol, atol=atol)
    assert jnp.allclose(nv, rv, rtol=rtol, atol=atol)
    assert jnp.allclose(nc, rc)


if __name__ == "__main__":
    key = jax.random.PRNGKey(0)
    k1, k2, k3, k4, k5 = jax.random.split(key, 5)

    # --- case 1: tiny shape, fused path, single full-extent block (grid=(1,)) ---
    B, D = 8, 32
    obs = jax.random.normal(k1, (B, D), dtype=jnp.float32) * 2.0 + 0.5
    rm = jnp.zeros((D,), jnp.float32)
    rv = jnp.ones((D,), jnp.float32)
    cnt = jnp.ones((), jnp.float32)
    got = running_mean_std_forward(obs, rm, rv, cnt)
    jax.block_until_ready(got)
    assert got[0].shape == (B, D) and got[0].dtype == obs.dtype
    _check(got, _reference(obs, rm, rv, cnt))

    # --- case 2: wider feature dim, fused path, split for >=2 grid steps ---
    B2, D2 = 16, 1280
    obs2 = jax.random.normal(k2, (B2, D2), dtype=jnp.float32) * 1.5 - 0.25
    rm2 = jax.random.normal(k3, (D2,), dtype=jnp.float32) * 0.1
    rv2 = jnp.ones((D2,), jnp.float32) * 0.5
    cnt2 = jnp.float32(5.0)
    got2 = running_mean_std_forward(obs2, rm2, rv2, cnt2)
    jax.block_until_ready(got2)
    _check(got2, _reference(obs2, rm2, rv2, cnt2))

    # --- case 3: D not a multiple of 128, fused path, ragged last lane block ---
    B3, D3 = 8, 200
    obs3 = jax.random.normal(k4, (B3, D3), dtype=jnp.float32) * 0.8 + 1.0
    rm3 = jnp.zeros((D3,), jnp.float32)
    rv3 = jnp.ones((D3,), jnp.float32)
    cnt3 = jnp.float32(2.0)
    got3 = running_mean_std_forward(obs3, rm3, rv3, cnt3)
    jax.block_until_ready(got3)
    _check(got3, _reference(obs3, rm3, rv3, cnt3))

    # --- case 4: forced batch-tiled two-sweep path (ragged batch + lane tiles) ---
    B4, D4 = 20, 200
    obs4 = jax.random.normal(k5, (B4, D4), dtype=jnp.float32) * 1.2 - 0.5
    rm4 = jnp.full((D4,), 0.1, jnp.float32)
    rv4 = jnp.full((D4,), 0.7, jnp.float32)
    cnt4 = jnp.float32(3.0)
    got4 = running_mean_std_forward(obs4, rm4, rv4, cnt4, batch_tile=8)
    jax.block_until_ready(got4)
    _check(got4, _reference(obs4, rm4, rv4, cnt4), rtol=1e-5, atol=1e-5)

    print("KERNEL_OK")
</pallas_src>

<mosaic_0001>
module attributes {stable_mosaic.version = 11 : i64} {
  func.func @_rms_fused_kernel(%arg0: i32, %arg1: memref<8x32xf32, #tpu.memory_space<vmem>>, %arg2: memref<1x32xf32, #tpu.memory_space<vmem>>, %arg3: memref<1x32xf32, #tpu.memory_space<vmem>>, %arg4: memref<1xf32, #tpu.memory_space<smem>>, %arg5: memref<8x32xf32, #tpu.memory_space<vmem>>, %arg6: memref<1x32xf32, #tpu.memory_space<vmem>>, %arg7: memref<1x32xf32, #tpu.memory_space<vmem>>) attributes {dimension_semantics = [#tpu.dimension_semantics<parallel>], iteration_bounds = array<i64: 1>, scalar_prefetch = 0 : i64, scratch_operands = 0 : i64, tpu.core_type = #tpu.core_type<tc>, window_params = [{transform_indices = @transform_0, window_bounds = array<i64: 8, 32>}, {transform_indices = @transform_1, window_bounds = array<i64: 1, 32>}, {transform_indices = @transform_2, window_bounds = array<i64: 1, 32>}, {transform_indices = @transform_3, window_bounds = array<i64: 1>}, {transform_indices = @transform_4, window_bounds = array<i64: 8, 32>}, {transform_indices = @transform_5, window_bounds = array<i64: 1, 32>}, {transform_indices = @transform_6, window_bounds = array<i64: 1, 32>}]} {
    %c0 = arith.constant 0 : index
    %c0_0 = arith.constant 0 : index
    %0 = vector.load %arg1[%c0, %c0_0] : memref<8x32xf32, #tpu.memory_space<vmem>>, vector<8x32xf32>
    %cst = arith.constant dense<0.000000e+00> : vector<32xf32>
    %1 = vector.multi_reduction <add>, %0, %cst [0] : vector<8x32xf32> to vector<32xf32>
    %2 = vector.shape_cast %1 : vector<32xf32> to vector<1x32xf32>
    %cst_1 = arith.constant 8.000000e+00 : f32
    %3 = vector.broadcast %cst_1 : f32 to vector<1x32xf32>
    %4 = arith.divf %2, %3 : vector<1x32xf32>
    %5 = vector.broadcast %4 : vector<1x32xf32> to vector<8x32xf32>
    %6 = arith.subf %0, %5 : vector<8x32xf32>
    %7 = arith.mulf %6, %6 : vector<8x32xf32>
    %cst_2 = arith.constant dense<0.000000e+00> : vector<32xf32>
    %8 = vector.multi_reduction <add>, %7, %cst_2 [0] : vector<8x32xf32> to vector<32xf32>
    %9 = vector.shape_cast %8 : vector<32xf32> to vector<1x32xf32>
    %cst_3 = arith.constant 8.000000e+00 : f32
    %10 = vector.broadcast %cst_3 : f32 to vector<1x32xf32>
    %11 = arith.divf %9, %10 : vector<1x32xf32>
    %c0_4 = arith.constant 0 : index
    %c0_5 = arith.constant 0 : index
    %12 = vector.load %arg2[%c0_4, %c0_5] : memref<1x32xf32, #tpu.memory_space<vmem>>, vector<1x32xf32>
    %c0_6 = arith.constant 0 : index
    %c0_7 = arith.constant 0 : index
    %13 = vector.load %arg3[%c0_6, %c0_7] : memref<1x32xf32, #tpu.memory_space<vmem>>, vector<1x32xf32>
    %c0_8 = arith.constant 0 : index
    %14 = memref.load %arg4[%c0_8] : memref<1xf32, #tpu.memory_space<smem>>
    %cst_9 = arith.constant 8.000000e+00 : f32
    %15 = arith.addf %14, %cst_9 : f32
    %cst_10 = arith.constant 8.000000e+00 : f32
    %16 = arith.divf %cst_10, %15 : f32
    %17 = arith.subf %4, %12 : vector<1x32xf32>
    %18 = vector.broadcast %16 : f32 to vector<1x32xf32>
    %19 = arith.mulf %17, %18 : vector<1x32xf32>
    %20 = arith.addf %12, %19 : vector<1x32xf32>
    %21 = vector.broadcast %14 : f32 to vector<1x32xf32>
    %22 = arith.mulf %13, %21 : vector<1x32xf32>
    %cst_11 = arith.constant 8.000000e+00 : f32
    %23 = vector.broadcast %cst_11 : f32 to vector<1x32xf32>
    %24 = arith.mulf %11, %23 : vector<1x32xf32>
    %25 = arith.addf %22, %24 : vector<1x32xf32>
    %26 = arith.mulf %17, %17 : vector<1x32xf32>
    %27 = arith.mulf %14, %16 : f32
    %28 = vector.broadcast %27 : f32 to vector<1x32xf32>
    %29 = arith.mulf %26, %28 : vector<1x32xf32>
    %30 = arith.addf %25, %29 : vector<1x32xf32>
    %31 = vector.broadcast %15 : f32 to vector<1x32xf32>
    %32 = arith.divf %30, %31 : vector<1x32xf32>
    %c0_12 = arith.constant 0 : index
    %c0_13 = arith.constant 0 : index
    %33 = vector.load %arg6[%c0_12, %c0_13] : memref<1x32xf32, #tpu.memory_space<vmem>>, vector<1x32xf32>
    tpu.vector_store %arg6[%c0_12, %c0_13], %20 {strides = array<i32>} : memref<1x32xf32, #tpu.memory_space<vmem>>, vector<1x32xf32>,
    %c0_14 = arith.constant 0 : index
    %c0_15 = arith.constant 0 : index
    %34 = vector.load %arg7[%c0_14, %c0_15] : memref<1x32xf32, #tpu.memory_space<vmem>>, vector<1x32xf32>
    tpu.vector_store %arg7[%c0_14, %c0_15], %32 {strides = array<i32>} : memref<1x32xf32, #tpu.memory_space<vmem>>, vector<1x32xf32>,
    %cst_16 = arith.constant 0.000000e+00 : f32
    %35 = vector.broadcast %cst_16 : f32 to vector<1x32xf32>
    %36 = arith.maximumf %32, %35 : vector<1x32xf32>
    %cst_17 = arith.constant 9.99999993E-9 : f32
    %37 = vector.broadcast %cst_17 : f32 to vector<1x32xf32>
    %38 = arith.addf %36, %37 : vector<1x32xf32>
    %39 = math.rsqrt %38 : vector<1x32xf32>
    %40 = arith.divf %14, %15 : f32
    %41 = vector.broadcast %40 : f32 to vector<1x32xf32>
    %42 = arith.mulf %17, %41 : vector<1x32xf32>
    %43 = vector.broadcast %42 : vector<1x32xf32> to vector<8x32xf32>
    %44 = arith.addf %6, %43 : vector<8x32xf32>
    %45 = vector.broadcast %39 : vector<1x32xf32> to vector<8x32xf32>
    %46 = arith.mulf %44, %45 : vector<8x32xf32>
    %c0_18 = arith.constant 0 : index
    %c0_19 = arith.constant 0 : index
    %47 = vector.load %arg5[%c0_18, %c0_19] : memref<8x32xf32, #tpu.memory_space<vmem>>, vector<8x32xf32>
    tpu.vector_store %arg5[%c0_18, %c0_19], %46 {strides = array<i32>} : memref<8x32xf32, #tpu.memory_space<vmem>>, vector<8x32xf32>,
    return
  }
  func.func @transform_0(%arg0: i32) -> (i32, i32) {
    %c0_i32 = arith.constant 0 : i32
    %c0_i32_0 = arith.constant 0 : i32
    return %c0_i32, %arg0 : i32, i32
  }
  func.func @transform_1(%arg0: i32) -> (i32, i32) {
    %c0_i32 = arith.constant 0 : i32
    %c0_i32_0 = arith.constant 0 : i32
    return %c0_i32, %arg0 : i32, i32
  }
  func.func @transform_2(%arg0: i32) -> (i32, i32) {
    %c0_i32 = arith.constant 0 : i32
    %c0_i32_0 = arith.constant 0 : i32
    return %c0_i32, %arg0 : i32, i32
  }
  func.func @transform_3(%arg0: i32) -> i32 {
    %c0_i32 = arith.constant 0 : i32
    %c0_i32_0 = arith.constant 0 : i32
    return %c0_i32 : i32
  }
  func.func @transform_4(%arg0: i32) -> (i32, i32) {
    %c0_i32 = arith.constant 0 : i32
    %c0_i32_0 = arith.constant 0 : i32
    return %c0_i32, %arg0 : i32, i32
  }
  func.func @transform_5(%arg0: i32) -> (i32, i32) {
    %c0_i32 = arith.constant 0 : i32
    %c0_i32_0 = arith.constant 0 : i32
    return %c0_i32, %arg0 : i32, i32
  }
  func.func @transform_6(%arg0: i32) -> (i32, i32) {
    %c0_i32 = arith.constant 0 : i32
    %c0_i32_0 = arith.constant 0 : i32
    return %c0_i32, %arg0 : i32, i32
  }
}

</mosaic_0001>

<llo_original>
// kernel: tpu_custom_call.1
$region0: #{tpu_custom_call.1}
  #allocation0 [shape = 'u32[]', space=smem, size = 0x4, offset = 0x4, fixed_abs, tag = 'smem constant byte address 0x4 - core index']
  #allocation1 [shape = 'u32[72,128]{1,0:T(1,128)}', space=vmem, size = 0x9000, scoped, tag = 'internal scratch']
  #allocation2 [shape = 'f32[1]{0:T(128)S(6)}', space=smem, size = 0x200, scoped, tag = 'scoped memory for tpu_custom_call.1']
  %s0 = inlined_call_operand.hbm [shape: f32[8,32], index: 0, kind: input, shape index: {}]
  %s1 = inlined_call_operand.vmem [shape: f32[1,32], index: 1, kind: input, shape index: {}]
  %s2 = inlined_call_operand.vmem [shape: f32[1,32], index: 2, kind: input, shape index: {}]
  %s3 = inlined_call_operand.<no memory space> [shape: f32[1], index: 3, kind: input, shape index: {}]
  %s4 = inlined_call_operand.hbm [shape: f32[8,32], index: 4, kind: output, shape index: {0}]
  %s5 = inlined_call_operand.hbm [shape: f32[1,32], index: 5, kind: output, shape index: {1}]
  %s6 = inlined_call_operand.hbm [shape: f32[1,32], index: 6, kind: output, shape index: {2}]
  %7 = xla_tuple %s4, %s5, %s6
  %s8 = sld [smem:[#allocation0]]
  $region46: #{tpu_custom_call.1} parent=0
    _
  %s10 = ssub.s32 1, %s8
  %s11 = scalar_select 0, %s10, %s8
  %12 = sst [smem:[#allocation2]] %s3
  $region1: #{tpu_custom_call.1} parent=0
    #allocation3 [shape = 'u8[4096]{0}', space=vmem, size = 0x1000, scoped, tag = 'input window, operand 0, single buffered']
    #allocation4 [shape = 's32[1]{0}', space=sflag, size = 0x4, scoped, tag = 'scoped memory for tpu_custom_call.1']
    #allocation5 [shape = 's32[1]{0}', space=sflag, size = 0x4, scoped, tag = 'scoped memory for tpu_custom_call.1']
    #allocation6 [shape = 'u8[4096]{0}', space=vmem, size = 0x1000, scoped, tag = 'output window, operand 0, single buffered']
    #allocation7 [shape = 'u8[512]{0}', space=vmem, size = 0x400, scoped, tag = 'output window, operand 1, single buffered']
    #allocation8 [shape = 's32[1]{0}', space=sflag, size = 0x4, scoped, tag = 'scoped memory for tpu_custom_call.1']
    #allocation9 [shape = 'u8[512]{0}', space=vmem, size = 0x400, scoped, tag = 'output window, operand 2, single buffered']
    %13 = vsyncpa [#allocation4], 0
    %14 = vsyncpa [#allocation5], 0
    %15 = vsyncpa [#allocation8], 0
    // Predicated region
    $region2: #{tpu_custom_call.1} parent=1 // pred_check
      _
    $region3: #{tpu_custom_call.1} parent=1 // pred_check_branch
      %17 = sbr.rel (0) target = $region5
    $region4: #{tpu_custom_call.1} parent=1 // pred_region
      %19 = vsyncadd [#allocation4], 0
      %s21 = sshll.u32 %s0, 4
      %s22 = int_to_ptr.hbm [resolvable:$true] %s21
      %s23 = sshll.u32 [#allocation3], 4
      %s24 = int_to_ptr.vmem [resolvable:$true] %s23
      %26 = dma.hbm_to_vmem [thread:$0]  %s22, 128, %s24, [#allocation4]
    $region5: #{tpu_custom_call.1} parent=1 // pred_fallthru
      _
    // Predicated region
    $region6: #{tpu_custom_call.1} parent=1 // pred_check
      _
    $region7: #{tpu_custom_call.1} parent=1 // pred_check_branch
      %28 = sbr.rel (0) target = $region9
    $region8: #{tpu_custom_call.1} parent=1 // pred_region
      _
    $region9: #{tpu_custom_call.1} parent=1 // pred_fallthru
      _
    // Predicated region
    $region10: #{tpu_custom_call.1} parent=1 // pred_check
      _
    $region11: #{tpu_custom_call.1} parent=1 // pred_check_branch
      %30 = sbr.rel (0) target = $region13
    $region12: #{tpu_custom_call.1} parent=1 // pred_region
      _
    $region13: #{tpu_custom_call.1} parent=1 // pred_fallthru
      _
    // Predicated region
    $region14: #{tpu_custom_call.1} parent=1 // pred_check
      _
    $region15: #{tpu_custom_call.1} parent=1 // pred_check_branch
      %32 = sbr.rel (0) target = $region17
    $region16: #{tpu_custom_call.1} parent=1 // pred_region
      _
    $region17: #{tpu_custom_call.1} parent=1 // pred_fallthru
      _
    // Predicated region
    $region18: #{tpu_custom_call.1} parent=1 // pred_check
      _
    $region19: #{tpu_custom_call.1} parent=1 // pred_check_branch
      %34 = sbr.rel (0) target = $region21
    $region20: #{tpu_custom_call.1} parent=1 // pred_region
      %36 = dma.done [#allocation4], 128
    $region21: #{tpu_custom_call.1} parent=1 // pred_fallthru
      _
    %v37 = vld [vmem:[#allocation3] sm:$0xff]
    %vm38 = vcmask 261120
    %v39 = vsel %vm38, %v37, 0.0
    %v40 = vrot.slane %v39, 4
    %v41 = vadd.f32 %v39, %v40
    %v42 = vrot.slane %v41, 2
    %v43 = vadd.f32 %v41, %v42
    %v44 = vrot.slane %v43, 1
    %v45 = vadd.f32 %v43, %v44
    %v46 = vrcp.pop 8.0
    %v47 = vmul.f32 8.0, %v46
    %v48 = vsub.f32 1.0, %v47
    %v49 = vmul.f32 %v46, %v48
    %v50 = vadd.f32 %v46, %v49
    %vm51 = vweird.f32 %v46
    %v52 = vsel %vm51, %v46, %v50
    %v53 = vmul.f32 %v45, %v52
    %v54 = vsub.f32 %v37, %v53
    %v55 = vmul.f32 %v54, %v54
    %v56 = vsel %vm38, %v55, 0.0
    %v57 = vrot.slane %v56, 4
    %v58 = vadd.f32 %v56, %v57
    %v59 = vrot.slane %v58, 2
    %v60 = vadd.f32 %v58, %v59
    %v61 = vrot.slane %v60, 1
    %v62 = vadd.f32 %v60, %v61
    %v63 = vmul.f32 %v62, %v52
    %v64 = vld [vmem:[%s1] sm:$0x1]
    %v65 = vld [vmem:[%s2] sm:$0x1]
    %s66 = sld [smem:[#allocation2]]
    %s67 = sadd.f32 %s66, 8.0
    %v68 = vstv %s67
    %v69 = vrcp.pop %v68
    %v70 = vmul.f32 %v68, %v69
    %v71 = vsub.f32 1.0, %v70
    %v72 = vmul.f32 %v69, %v71
    %v73 = vadd.f32 %v69, %v72
    %vm74 = vweird.f32 %v68
    %vm75 = vweird.f32 %v69
    %vm76 = vmor %vm74, %vm75
    %v77 = vsel %vm76, %v69, %v73
    %v78 = vand.u32 2147483647, %v68
    %vm79 = vcmp.eq.f32.partialorder %v78, 8.507059e+37
    %v80 = vand.u32 %v68, 2147483648
    %v81 = vor.u32 1.1754944e-38, %v80
    %v82 = vsel %vm79, %v81, %v77
    %s83 = vtos %v82
    %s84 = smul.f32 8.0, %s83
    %v85 = vsub.f32 %v53, %v64
    %v86 = vstv %s84
    %v87 = vmul.f32 %v85, %v86
    %v88 = vadd.f32 %v64, %v87
    %v89 = vstv %s66
    %v90 = vmul.f32 %v65, %v89
    %v91 = vmul.f32 %v63, 8.0
    %v92 = vadd.f32 %v90, %v91
    %v93 = vmul.f32 %v85, %v85
    %s94 = smul.f32 %s66, %s84
    %v95 = vstv %s94
    %v96 = vmul.f32 %v93, %v95
    %v97 = vadd.f32 %v92, %v96
    %v98 = vstv %s67
    %v99 = vrcp.pop %v98
    %v100 = vmul.f32 %v98, %v99
    %v101 = vsub.f32 1.0, %v100
    %v102 = vmul.f32 %v99, %v101
    %v103 = vadd.f32 %v99, %v102
    %vm104 = vweird.f32 %v98
    %vm105 = vweird.f32 %v99
    %vm106 = vmor %vm104, %vm105
    %v107 = vsel %vm106, %v99, %v103
    %v108 = vand.u32 2147483647, %v98
    %vm109 = vcmp.eq.f32.partialorder %v108, 8.507059e+37
    %v110 = vand.u32 %v98, 2147483648
    %v111 = vor.u32 1.1754944e-38, %v110
    %v112 = vsel %vm109, %v111, %v107
    %v113 = vmul.f32 %v97, %v112
    %vm114 = vcmask 253952
    %115 = vst.msk [vmem:[#allocation7] sm:$0x1] %vm114, %v88
    %116 = vst.msk [vmem:[#allocation9] sm:$0x1] %vm114, %v113
    %v117 = vmax.f32 %v113, 0.0
    %v118 = vadd.f32 %v117, 1e-08
    %v119 = vrsqrt.pop %v118
    %v120 = vmul.f32 %v119, %v118
    %v121 = vmul.f32 %v120, %v119
    %v122 = vmul.f32 0.5, %v121
    %v123 = vsub.f32 1.5, %v122
    %v124 = vmul.f32 %v119, %v123
    %vm125 = vweird.f32 %v118
    %vm126 = vweird.f32 %v119
    %vm127 = vmor %vm125, %vm126
    %v128 = vsel %vm127, %v119, %v124
    %v129 = vstv %s67
    %v130 = vrcp.pop %v129
    %v131 = vmul.f32 %v129, %v130
    %v132 = vsub.f32 1.0, %v131
    %v133 = vmul.f32 %v130, %v132
    %v134 = vadd.f32 %v130, %v133
    %vm135 = vweird.f32 %v129
    %vm136 = vweird.f32 %v130
    %vm137 = vmor %vm135, %vm136
    %v138 = vsel %vm137, %v130, %v134
    %v139 = vand.u32 2147483647, %v129
    %vm140 = vcmp.eq.f32.partialorder %v139, 8.507059e+37
    %v141 = vand.u32 %v129, 2147483648
    %v142 = vor.u32 1.1754944e-38, %v141
    %v143 = vsel %vm140, %v142, %v138
    %s144 = vtos %v143
    %s145 = smul.f32 %s66, %s144
    %v146 = vstv %s145
    %v147 = vmul.f32 %v85, %v146
    %v148 = vperm.slane %v147, 0
    %v149 = vadd.f32 %v54, %v148
    %v151 = vperm.slane %v128, 0
    %v153 = vmul.f32 %v149, %v151
    %154 = vst.msk [vmem:[#allocation6] sm:$0xff] %vm38, %v153
    // Predicated region
    $region22: #{tpu_custom_call.1} parent=1 // pred_check
      _
    $region23: #{tpu_custom_call.1} parent=1 // pred_check_branch
      %156 = sbr.rel (0) target = $region25
    $region24: #{tpu_custom_call.1} parent=1 // pred_region
      %158 = vsyncadd [#allocation5], 0
      %s160 = sshll.u32 [#allocation6], 4
      %s161 = int_to_ptr.vmem [resolvable:$true] %s160
      %s162 = sshll.u32 %s4, 4
      %s163 = int_to_ptr.hbm [resolvable:$true] %s162
      %165 = dma.vmem_to_hbm [thread:$0]  %s161, 128, %s163, [#allocation5]
    $region25: #{tpu_custom_call.1} parent=1 // pred_fallthru
      _
    // Predicated region
    $region26: #{tpu_custom_call.1} parent=1 // pred_check
      _
    $region27: #{tpu_custom_call.1} parent=1 // pred_check_branch
      %167 = sbr.rel (0) target = $region29
    $region28: #{tpu_custom_call.1} parent=1 // pred_region
      %169 = vsyncadd [#allocation8], 0
      %s171 = sshll.u32 [#allocation7], 4
      %s172 = int_to_ptr.vmem [resolvable:$true] %s171
      %s173 = sshll.u32 %s5, 4
      %s174 = int_to_ptr.hbm [resolvable:$true] %s173
      %176 = dma.vmem_to_hbm [thread:$0]  %s172, 16, %s174, [#allocation8]
    $region29: #{tpu_custom_call.1} parent=1 // pred_fallthru
      _
    // Predicated region
    $region30: #{tpu_custom_call.1} parent=1 // pred_check
      _
    $region31: #{tpu_custom_call.1} parent=1 // pred_check_branch
      %178 = sbr.rel (0) target = $region33
    $region32: #{tpu_custom_call.1} parent=1 // pred_region
      %180 = vsyncadd [#allocation8], 0
      %s182 = sshll.u32 [#allocation9], 4
      %s183 = int_to_ptr.vmem [resolvable:$true] %s182
      %s184 = sshll.u32 %s6, 4
      %s185 = int_to_ptr.hbm [resolvable:$true] %s184
      %187 = dma.vmem_to_hbm [thread:$0]  %s183, 16, %s185, [#allocation8]
    $region33: #{tpu_custom_call.1} parent=1 // pred_fallthru
      _
    // Predicated region
    $region34: #{tpu_custom_call.1} parent=1 // pred_check
      _
    $region35: #{tpu_custom_call.1} parent=1 // pred_check_branch
      %189 = sbr.rel (0) target = $region37
    $region36: #{tpu_custom_call.1} parent=1 // pred_region
      %191 = dma.done [#allocation5], 128
    $region37: #{tpu_custom_call.1} parent=1 // pred_fallthru
      _
    // Predicated region
    $region38: #{tpu_custom_call.1} parent=1 // pred_check
      _
    $region39: #{tpu_custom_call.1} parent=1 // pred_check_branch
      %193 = sbr.rel (0) target = $region41
    $region40: #{tpu_custom_call.1} parent=1 // pred_region
      %195 = dma.done [#allocation8], 16
    $region41: #{tpu_custom_call.1} parent=1 // pred_fallthru
      _
    // Predicated region
    $region42: #{tpu_custom_call.1} parent=1 // pred_check
      _
    $region43: #{tpu_custom_call.1} parent=1 // pred_check_branch
      %197 = sbr.rel (0) target = $region45
    $region44: #{tpu_custom_call.1} parent=1 // pred_region
      %199 = dma.done [#allocation8], 16
    $region45: #{tpu_custom_call.1} parent=1 // pred_fallthru
      _
    %200 = vsyncpa [#allocation4], 1
    %201 = vsyncpa [#allocation5], 1
    %202 = vsyncpa [#allocation8], 1

</llo_original>
